<compile_context>
chip_gen: v7x
topology: tpu7x:2x2x1
jax: 0.10.0
libtpu: 0.0.40
codegen_flags: <defaults>
</compile_context>

<pallas_src>
import functools
import math

import jax
import jax.numpy as jnp
from jax.experimental import pallas as pl
from jax.experimental.pallas import tpu as pltpu


_F32_SUBLANE = 8          # f32 sublane quantum
_TARGET_LANES = 16384     # ~1.5 MiB in+out per grid step for 8-in/16-out f32


def _conv1x1_relu_kernel(x_ref, w_ref, b_ref, o_ref):
    # x_ref: (rows_in,  t_hw)    packed channels on sublanes, spatial on lanes
    # w_ref: (rows_out, rows_in) resident block-diagonal weight (constant map)
    # b_ref: (rows_out, 1)       resident bias
    # o_ref: (rows_out, t_hw)
    y = jnp.dot(w_ref[...], x_ref[...], preferred_element_type=jnp.float32)
    y = y + b_ref[...]                     # (rows_out, 1) broadcast over lanes
    o_ref[...] = jnp.maximum(y, 0.0).astype(o_ref.dtype)


def _pack_factor(batch, c_in):
    """Batch-packing factor g so g*c_in fills the f32 sublane quantum."""
    g = _F32_SUBLANE // math.gcd(c_in, _F32_SUBLANE)
    if g > 1 and batch % g == 0:
        return g
    return 1   # unpacked fallback (accepts sublane padding on the input DMA)


def _pick_lane_tile(s, target_lanes):
    """Lane tile: full extent for small maps (no padding), else a large
    128-multiple tile (last block may be ragged; Pallas masks the tail)."""
    if s <= target_lanes:
        return s
    return target_lanes


@functools.partial(jax.jit, static_argnames=("g", "t_hw"))
def _apply_one_map(x_nchw, w_bd, b_col, *, g, t_hw):
    """1x1-conv + ReLU on one NCHW feature map via a single pallas_call."""
    B, c_in, H, W = x_nchw.shape
    S = H * W
    rows_in = g * c_in
    rows_out = w_bd.shape[0]          # g * c_out
    n_groups = B // g

    # Free, row-major reshape: group k, rows [j*c_in:(j+1)*c_in] are batch
    # k*g + j.  No transposes, no pads, no copies.
    x_rows = x_nchw.reshape(n_groups, rows_in, S)

    grid = (n_groups, pl.cdiv(S, t_hw))

    # Per-step VMEM: (rows_in + rows_out) * t_hw * 4B * 2 buffers + resident
    # w/b — ~3 MiB worst case here, well under the scoped default of 16 MiB
    # (v5e) / 32 MiB (v6e/v7x).
    out_rows = pl.pallas_call(
        _conv1x1_relu_kernel,
        out_shape=jax.ShapeDtypeStruct((n_groups, rows_out, S), x_nchw.dtype),
        grid_spec=pltpu.PrefetchScalarGridSpec(
            num_scalar_prefetch=0,
            grid=grid,
            in_specs=[
                pl.BlockSpec((pl.Squeezed(), rows_in, t_hw),
                             lambda b, s: (b, 0, s)),
                pl.BlockSpec((rows_out, rows_in), lambda b, s: (0, 0)),
                pl.BlockSpec((rows_out, 1), lambda b, s: (0, 0)),
            ],
            out_specs=pl.BlockSpec((pl.Squeezed(), rows_out, t_hw),
                                   lambda b, s: (b, 0, s)),
        ),
        compiler_params=pltpu.CompilerParams(
            dimension_semantics=("parallel", "parallel"),
        ),
        cost_estimate=pl.CostEstimate(
            flops=2 * n_groups * S * rows_out * rows_in,
            transcendentals=0,
            bytes_accessed=4 * (n_groups * S * (rows_in + rows_out)
                                + rows_out * rows_in + rows_out),
        ),
    )(x_rows, w_bd, b_col)

    # Free reshapes back: (B/g, g*C_out, S) -> (B, C_out, H, W).
    c_out = rows_out // g
    return out_rows.reshape(B, c_out, H, W)


def apply_all(in_list, w, b, *, target_lanes=_TARGET_LANES):
    """ApplyAll.forward: Conv2d(C_in, C_out, 1) + ReLU on every input map.

    in_list: list of NCHW arrays sharing (B, C_in).
    w:       (C_in, C_out) 1x1-conv weight.
    b:       (C_out,) bias.
    """
    assert len(in_list) > 0
    B, c_in = in_list[0].shape[0], in_list[0].shape[1]
    for x in in_list:
        assert x.ndim == 4 and x.shape[0] == B and x.shape[1] == c_in, (
            "all ApplyAll inputs must share (batch, channels): "
            f"got {x.shape} vs ({B}, {c_in}, ...)")
    c_out = w.shape[1]

    g = _pack_factor(B, c_in)
    # Block-diagonal weight / tiled bias for the packed row layout (tiny,
    # one-time arrays).
    w_t = jnp.transpose(w).astype(jnp.float32)            # (C_out, C_in)
    w_bd = jnp.kron(jnp.eye(g, dtype=w_t.dtype), w_t)     # (g*C_out, g*C_in)
    b_col = jnp.tile(jnp.reshape(b, (c_out, 1)).astype(jnp.float32), (g, 1))

    out_list = []
    for x in in_list:
        s = x.shape[2] * x.shape[3]
        t_hw = int(_pick_lane_tile(s, target_lanes))
        out_list.append(_apply_one_map(x, w_bd, b_col, g=g, t_hw=t_hw))
    return out_list


if __name__ == "__main__":
    key = jax.random.PRNGKey(0)
    k_w, k_b, k0, k1, k2, k3 = jax.random.split(key, 6)

    C_in, C_out = 4, 8
    w = jax.random.normal(k_w, (C_in, C_out), dtype=jnp.float32) * 0.1
    b = jax.random.normal(k_b, (C_out,), dtype=jnp.float32) * 0.1

    def _check(in_list):
        out_list = apply_all(in_list, w, b)
        for o in out_list:
            jax.block_until_ready(o)
        for x, o in zip(in_list, out_list):
            ref = jnp.einsum("bchw,co->bohw", x, w) + b.reshape(1, C_out, 1, 1)
            ref = jnp.maximum(ref, 0.0)
            assert o.shape == (x.shape[0], C_out, x.shape[2], x.shape[3])
            assert jnp.allclose(o, ref, atol=1e-5, rtol=1e-5), float(
                jnp.max(jnp.abs(o - ref)))

    # Even batch -> sublane-packed path (g=2: 8-row input / 16-row output).
    _check([
        jax.random.normal(k0, (2, C_in, 16, 16), dtype=jnp.float32),
        jax.random.normal(k1, (2, C_in, 8, 8), dtype=jnp.float32),
        jax.random.normal(k2, (2, C_in, 4, 4), dtype=jnp.float32),
    ])

    # Odd batch -> unpacked fallback path (g=1).
    _check([jax.random.normal(k3, (3, C_in, 8, 8), dtype=jnp.float32)])

    print("KERNEL_OK")
</pallas_src>

<mosaic_0001>
module attributes {stable_mosaic.version = 11 : i64} {
  func.func @_conv1x1_relu_kernel(%arg0: i32, %arg1: i32, %arg2: memref<1x8x256xf32, #tpu.memory_space<vmem>>, %arg3: memref<16x8xf32, #tpu.memory_space<vmem>>, %arg4: memref<16x1xf32, #tpu.memory_space<vmem>>, %arg5: memref<1x16x256xf32, #tpu.memory_space<vmem>>) attributes {dimension_semantics = [#tpu.dimension_semantics<parallel>, #tpu.dimension_semantics<parallel>], iteration_bounds = array<i64: 1, 1>, scalar_prefetch = 0 : i64, scratch_operands = 0 : i64, tpu.core_type = #tpu.core_type<tc>, window_params = [{transform_indices = @transform_0, window_bounds = array<i64: 1, 8, 256>}, {pipeline_mode = #tpu.pipeline_mode<synchronous>, transform_indices = @transform_1, window_bounds = array<i64: 16, 8>}, {pipeline_mode = #tpu.pipeline_mode<synchronous>, transform_indices = @transform_2, window_bounds = array<i64: 16, 1>}, {transform_indices = @transform_3, window_bounds = array<i64: 1, 16, 256>}]} {
    %c0 = arith.constant 0 : index
    %c0_0 = arith.constant 0 : index
    %0 = vector.load %arg3[%c0, %c0_0] : memref<16x8xf32, #tpu.memory_space<vmem>>, vector<16x8xf32>
    %c0_1 = arith.constant 0 : index
    %c0_2 = arith.constant 0 : index
    %c0_3 = arith.constant 0 : index
    %1 = vector.load %arg2[%c0_1, %c0_2, %c0_3] : memref<1x8x256xf32, #tpu.memory_space<vmem>>, vector<1x8x256xf32>
    %2 = vector.shape_cast %1 : vector<1x8x256xf32> to vector<8x256xf32>
    %cst = arith.constant dense<0.000000e+00> : vector<16x256xf32>
    %3 = tpu.matmul %0, %2, %cst {dimension_numbers = #tpu.dot_dimension_numbers<[1], [0], [0], [1], [0, 0, 1, 1], [], []>} : vector<16x8xf32>, vector<8x256xf32>, vector<16x256xf32> -> vector<16x256xf32>
    %c0_4 = arith.constant 0 : index
    %c0_5 = arith.constant 0 : index
    %4 = vector.load %arg4[%c0_4, %c0_5] : memref<16x1xf32, #tpu.memory_space<vmem>>, vector<16x1xf32>
    %5 = vector.broadcast %4 : vector<16x1xf32> to vector<16x256xf32>
    %6 = arith.addf %3, %5 : vector<16x256xf32>
    %cst_6 = arith.constant 0.000000e+00 : f32
    %7 = vector.broadcast %cst_6 : f32 to vector<16x256xf32>
    %8 = arith.maximumf %6, %7 : vector<16x256xf32>
    %c0_7 = arith.constant 0 : index
    %c0_8 = arith.constant 0 : index
    %c0_9 = arith.constant 0 : index
    %9 = vector.load %arg5[%c0_7, %c0_8, %c0_9] : memref<1x16x256xf32, #tpu.memory_space<vmem>>, vector<1x16x256xf32>
    %10 = vector.shape_cast %9 : vector<1x16x256xf32> to vector<16x256xf32>
    %11 = vector.shape_cast %8 : vector<16x256xf32> to vector<1x16x256xf32>
    tpu.vector_store %arg5[%c0_7, %c0_8, %c0_9], %11 {strides = array<i32>} : memref<1x16x256xf32, #tpu.memory_space<vmem>>, vector<1x16x256xf32>,
    return
  }
  func.func @transform_0(%arg0: i32, %arg1: i32) -> (i32, i32, i32) {
    %c0_i32 = arith.constant 0 : i32
    %c0_i32_0 = arith.constant 0 : i32
    return %arg0, %c0_i32, %arg1 : i32, i32, i32
  }
  func.func @transform_1(%arg0: i32, %arg1: i32) -> (i32, i32) {
    %c0_i32 = arith.constant 0 : i32
    %c0_i32_0 = arith.constant 0 : i32
    %c0_i32_1 = arith.constant 0 : i32
    return %c0_i32, %c0_i32_0 : i32, i32
  }
  func.func @transform_2(%arg0: i32, %arg1: i32) -> (i32, i32) {
    %c0_i32 = arith.constant 0 : i32
    %c0_i32_0 = arith.constant 0 : i32
    %c0_i32_1 = arith.constant 0 : i32
    return %c0_i32, %c0_i32_0 : i32, i32
  }
  func.func @transform_3(%arg0: i32, %arg1: i32) -> (i32, i32, i32) {
    %c0_i32 = arith.constant 0 : i32
    %c0_i32_0 = arith.constant 0 : i32
    return %arg0, %c0_i32, %arg1 : i32, i32, i32
  }
}

</mosaic_0001>

<llo_original>
// kernel: _apply_one_map.1
$region0: #{_apply_one_map.1}
  #allocation0 [shape = 'u32[]', space=smem, size = 0x4, offset = 0x4, fixed_abs, tag = 'smem constant byte address 0x4 - core index']
  #allocation1 [shape = 'u32[144,128]{1,0:T(1,128)}', space=vmem, size = 0x12000, scoped, tag = 'internal scratch']
  %s0 = inlined_call_operand.vmem [shape: f32[1,8,256], index: 0, kind: input, shape index: {}]
  %s1 = inlined_call_operand.vmem [shape: f32[16,8], index: 1, kind: input, shape index: {}]
  %s2 = inlined_call_operand.vmem [shape: f32[16,1], index: 2, kind: input, shape index: {}]
  %s3 = inlined_call_operand.vmem [shape: f32[1,16,256], index: 3, kind: output, shape index: {}]
  %s4 = sld [smem:[#allocation0]]
  $region22: #{_apply_one_map.1} parent=0
    _
  %s6 = ssub.s32 1, %s4
  %s7 = scalar_select 0, %s6, %s4
  // Predicated region
  $region2: #{_apply_one_map.1} parent=0 // pred_check
    _
  $region3: #{_apply_one_map.1} parent=0 // pred_check_branch
    %9 = sbr.rel (0) target = $region5
  $region4: #{_apply_one_map.1} parent=0 // pred_region
    _
  $region5: #{_apply_one_map.1} parent=0 // pred_fallthru
    _
  // Predicated region
  $region6: #{_apply_one_map.1} parent=0 // pred_check
    _
  $region7: #{_apply_one_map.1} parent=0 // pred_check_branch
    %11 = sbr.rel (0) target = $region9
  $region8: #{_apply_one_map.1} parent=0 // pred_region
    _
  $region9: #{_apply_one_map.1} parent=0 // pred_fallthru
    _
  // Predicated region
  $region10: #{_apply_one_map.1} parent=0 // pred_check
    _
  $region11: #{_apply_one_map.1} parent=0 // pred_check_branch
    %13 = sbr.rel (0) target = $region13
  $region12: #{_apply_one_map.1} parent=0 // pred_region
    _
  $region13: #{_apply_one_map.1} parent=0 // pred_fallthru
    _
  %v14 = vld [vmem:[%s1] sm:$0xff]
  %v15 = vld [vmem:[%s1 + $0x8] sm:$0xff]
  %v16 = vld [vmem:[%s0] sm:$0xff]
  %v17 = vld [vmem:[%s0 + $0x8] sm:$0xff]
  %v18 = vld [vmem:[%s2] sm:$0xff]
  %v19 = vld [vmem:[%s2 + $0x8] sm:$0xff]
  %21 = vset.pattern.permute.xlu0 0
  %22 = vperm.xlu0 %21, %v18
  %v23 = vpop.permute.xlu0 %22
  %26 = vset.pattern.permute.xlu0 0
  %27 = vperm.xlu0 %26, %v19
  %v28 = vpop.permute.xlu0 %27
  %vm30 = vcmask 64512
  %v32 = vsel %vm30, %v14, 0
  %v35 = vsel %vm30, %v15, 0
  %37 = vmatprep.subr.mxu0 %v17
  %38 = vmatpush1.msra.mxu0 %v16
  %39 = vmatprep.subr.mxu0 0.0
  %40 = vmatpush1.msra.mxu0 0.0
  %41 = vmatprep.subr.mxu0 0.0
  %42 = vmatpush1.msra.mxu0 0.0
  %43 = vmatprep.subr.mxu0 0.0
  %44 = vmatpush1.msra.mxu0 0.0
  %45 = vmatprep.subr.mxu0 0.0
  %46 = vmatpush1.msra.mxu0 0.0
  %47 = vmatprep.subr.mxu0 0.0
  %48 = vmatpush1.msra.mxu0 0.0
  %49 = vmatprep.subr.mxu0 0.0
  %50 = vmatpush1.msra.mxu0 0.0
  %51 = vmatprep.subr.mxu0 0.0
  %52 = vmatpush1.msra.mxu0 0.0
  %53 = vmatprep.subr.mxu0 0.0
  %54 = vmatpush1.msra.mxu0 0.0
  %55 = vmatprep.subr.mxu0 0.0
  %56 = vmatpush1.msra.mxu0 0.0
  %57 = vmatprep.subr.mxu0 0.0
  %58 = vmatpush1.msra.mxu0 0.0
  %59 = vmatprep.subr.mxu0 0.0
  %60 = vmatpush1.msra.mxu0 0.0
  %61 = vmatprep.subr.mxu0 0.0
  %62 = vmatpush1.msra.mxu0 0.0
  %63 = vmatprep.subr.mxu0 0.0
  %64 = vmatpush1.msra.mxu0 0.0
  %65 = vmatprep.subr.mxu0 0.0
  %66 = vmatpush1.msra.mxu0 0.0
  %67 = vmatprep.subr.mxu0 0.0
  %68 = vmatpush1.msra.mxu0 0.0
  %69 = vmatprep.subr.mxu0 0.0
  %70 = vmatpush1.msra.mxu0 0.0
  %71 = vmatprep.subr.mxu0 0.0
  %72 = vmatpush1.msra.mxu0 0.0
  %73 = vmatprep.subr.mxu0 0.0
  %74 = vmatpush1.msra.mxu0 0.0
  %75 = vmatprep.subr.mxu0 0.0
  %76 = vmatpush1.msra.mxu0 0.0
  %77 = vmatprep.subr.mxu0 0.0
  %78 = vmatpush1.msra.mxu0 0.0
  %79 = vmatprep.subr.mxu0 0.0
  %80 = vmatpush1.msra.mxu0 0.0
  %81 = vmatprep.subr.mxu0 0.0
  %82 = vmatpush1.msra.mxu0 0.0
  %83 = vmatprep.subr.mxu0 0.0
  %84 = vmatpush1.msra.mxu0 0.0
  %85 = vmatprep.subr.mxu0 0.0
  %86 = vmatpush1.msra.mxu0 0.0
  %87 = vmatprep.subr.mxu0 0.0
  %88 = vmatpush1.msra.mxu0 0.0
  %89 = vmatprep.subr.mxu0 0.0
  %90 = vmatpush1.msra.mxu0 0.0
  %91 = vmatprep.subr.mxu0 0.0
  %92 = vmatpush1.msra.mxu0 0.0
  %93 = vmatprep.subr.mxu0 0.0
  %94 = vmatpush1.msra.mxu0 0.0
  %95 = vmatprep.subr.mxu0 0.0
  %96 = vmatpush1.msra.mxu0 0.0
  %97 = vmatprep.subr.mxu0 0.0
  %98 = vmatpush1.msra.mxu0 0.0
  %99 = vmatprep.subr.mxu0 0.0
  %100 = vmatpush1.msra.mxu0 0.0
  %101 = vmatprep.mubr.f32.mxu0 0.0
  %102 = vmatmul.mubr.f32.gmra.mrb[0].mxu0 %v32
  %v103 = vpop.f32.mrb[0].mxu0
  %v104 = vadd.f32 %v23, %v103
  %v105 = vpop.f32.mrb[0].mxu0
  %v106 = vadd.f32 %v23, %v105
  %107 = vmatprep.mubr.f32.mxu0 0.0
  %108 = vmatmul.mubr.f32.gmra.mrb[0].mxu0 %v35
  %v109 = vpop.f32.mrb[0].mxu0
  %v110 = vadd.f32 %v28, %v109
  %v111 = vpop.f32.mrb[0].mxu0
  %v112 = vadd.f32 %v28, %v111
  %113 = vdwg.mxu0
  %v114 = vmax.f32 %v104, 0.0
  %v115 = vmax.f32 %v106, 0.0
  %v116 = vmax.f32 %v110, 0.0
  %v117 = vmax.f32 %v112, 0.0
  %118 = vst [vmem:[%s3] sm:$0xff] %v114
  %119 = vst [vmem:[%s3 + $0x8] sm:$0xff] %v115
  %120 = vst [vmem:[%s3 + $0x10] sm:$0xff] %v116
  %121 = vst [vmem:[%s3 + $0x18] sm:$0xff] %v117
  // Predicated region
  $region14: #{_apply_one_map.1} parent=0 // pred_check
    _
  $region15: #{_apply_one_map.1} parent=0 // pred_check_branch
    %123 = sbr.rel (0) target = $region17
  $region16: #{_apply_one_map.1} parent=0 // pred_region
    _
  $region17: #{_apply_one_map.1} parent=0 // pred_fallthru
    _
  // Predicated region
  $region18: #{_apply_one_map.1} parent=0 // pred_check
    _
  $region19: #{_apply_one_map.1} parent=0 // pred_check_branch
    %125 = sbr.rel (0) target = $region21
  $region20: #{_apply_one_map.1} parent=0 // pred_region
    _
  $region21: #{_apply_one_map.1} parent=0 // pred_fallthru
    _

</llo_original>
